<compile_context>
chip_gen: v7x
topology: tpu7x:2x2x1
jax: 0.10.0
libtpu: 0.0.40
codegen_flags: <defaults>
</compile_context>

<pallas_src>
import jax
import jax.numpy as jnp
from jax.experimental import pallas as pl
from jax.experimental.pallas import tpu as pltpu
import numpy as np

# "config" (small, deterministic, consistent with the module)
WORD_EMB_SIZE = 96
CHAR_EMB_SIZE = 32
DIM = WORD_EMB_SIZE + CHAR_EMB_SIZE   # highway dim = 128 (lane-friendly)
B, S, W = 2, 16, 8                     # batch, sentence_length, word_length


def _round_up(x, m):
    return ((x + m - 1) // m) * m


def highway_kernel(x_ref, w_ref, b_ref, o_ref):
    """x_ref: (T, D) bf16 activations;
    w_ref: (2, D, 2D) bf16 (layer-stacked, gate|linear fused);
    b_ref: (2, 1, 2D) f32 (layer-stacked, gate|linear fused);
    o_ref: (T, D) out_dtype."""
    x_bf = x_ref[...]                       # (T, D) bf16, fed straight to the MXU
    x = x_bf.astype(jnp.float32)            # residual/elementwise path stays f32
    d = x.shape[-1]

    # Layer 0: single fused MXU matmul (K=128, N=256), bf16 operands, f32 accumulate.
    y = jnp.dot(x_bf, w_ref[0], preferred_element_type=jnp.float32) + b_ref[0]
    g = jax.nn.sigmoid(y[:, :d])            # gate half   (static lane slice)
    nl = jnp.maximum(y[:, d:], 0.0)         # linear half (static lane slice)
    x = x + g * (nl - x)                    # == g*nl + (1-g)*x

    # Layer 1 (same structure; one bf16 cast for the MXU operand).
    y = jnp.dot(x.astype(jnp.bfloat16), w_ref[1],
                preferred_element_type=jnp.float32) + b_ref[1]
    g = jax.nn.sigmoid(y[:, :d])
    nl = jnp.maximum(y[:, d:], 0.0)
    x = x + g * (nl - x)

    o_ref[...] = x.astype(o_ref.dtype)


def prepare_params(params):
    """One-time parameter packing: fuse gate|linear per layer and stack the 2 layers.
    Returns (fused_w (2, D, 2D) bf16, fused_b (2, 1, 2D) f32)."""
    fused_w = jnp.stack([
        jnp.concatenate([params["wg0"], params["wl0"]], axis=1),
        jnp.concatenate([params["wg1"], params["wl1"]], axis=1),
    ]).astype(jnp.bfloat16)
    fused_b = jnp.stack([
        jnp.concatenate([params["bg0"], params["bl0"]], axis=1),
        jnp.concatenate([params["bg1"], params["bl1"]], axis=1),
    ]).astype(jnp.float32)
    return fused_w, fused_b


def embedding_forward(word_emb, char_emb, fused_w, fused_b, *,
                      tile_rows=2048, out_dtype=jnp.float32):
    """word_emb: (B, S, Dw), char_emb: (B, S, W, Dc) -> (B, S, Dw+Dc) out_dtype."""
    bsz, s, dw = word_emb.shape
    _, _, _w, dc = char_emb.shape
    d = dw + dc
    n = bsz * s

    # char-max over word_length, dropout (eval -> identity), concat; ship bf16 to
    # halve the activation HBM round trip. XLA fuses max+concat+cast+pad producers.
    c = jnp.max(char_emb, axis=2)
    x0 = jnp.concatenate([word_emb, c], axis=-1).reshape(n, d).astype(jnp.bfloat16)

    # Row tiling: large tiles (multiple of 256) amortize ~0.35us/step overhead; when
    # N is big enough, cap at ceil(N/2) rounded to 256 so grid >= 2 and the "parallel"
    # axis can shard across both v7x TensorCores. Small N -> single tile (mult of 8).
    if n >= 512:
        tile = min(tile_rows, _round_up(-(-n // 2), 256))
    else:
        tile = _round_up(n, 8)
    n_pad = _round_up(n, tile)
    if n_pad != n:
        x0 = jnp.pad(x0, ((0, n_pad - n), (0, 0)))

    out = pl.pallas_call(
        highway_kernel,
        out_shape=jax.ShapeDtypeStruct((n_pad, d), out_dtype),
        grid=(n_pad // tile,),
        in_specs=[
            pl.BlockSpec((tile, d), lambda i: (i, 0)),            # activations (tiled rows)
            pl.BlockSpec((2, d, 2 * d), lambda i: (0, 0, 0)),     # stacked fused weights (resident)
            pl.BlockSpec((2, 1, 2 * d), lambda i: (0, 0, 0)),     # stacked fused biases  (resident)
        ],
        out_specs=pl.BlockSpec((tile, d), lambda i: (i, 0)),
        compiler_params=pltpu.CompilerParams(
            dimension_semantics=("parallel",)),                   # v7x: tiles over 2 TCs
    )(x0, fused_w, fused_b)

    return out[:n].reshape(bsz, s, d)


# ---------------- references ----------------

def _reference_f32(word_emb, char_emb, params):
    """Exact module semantics, pure f32 (eval-mode dropout = identity)."""
    c = jnp.max(char_emb, axis=2)
    x = jnp.concatenate([word_emb, c], axis=2)
    for i in range(2):
        g = jax.nn.sigmoid(x @ params[f"wg{i}"] + params[f"bg{i}"])
        nl = jnp.maximum(x @ params[f"wl{i}"] + params[f"bl{i}"], 0.0)
        x = g * nl + (1.0 - g) * x
    return x


def _reference_bf16(word_emb, char_emb, params):
    """Same math as the kernel: bf16-rounded input activation, bf16 matmul operands,
    f32 accumulate and f32 elementwise/residual."""
    c = jnp.max(char_emb, axis=2)
    x = jnp.concatenate([word_emb, c], axis=2).astype(jnp.bfloat16).astype(jnp.float32)
    for i in range(2):
        xb = x.astype(jnp.bfloat16)
        g = jax.nn.sigmoid(
            jnp.dot(xb, params[f"wg{i}"].astype(jnp.bfloat16),
                    preferred_element_type=jnp.float32) + params[f"bg{i}"])
        nl = jnp.maximum(
            jnp.dot(xb, params[f"wl{i}"].astype(jnp.bfloat16),
                    preferred_element_type=jnp.float32) + params[f"bl{i}"], 0.0)
        x = x + g * (nl - x)
    return x


def init_params(key, dim):
    # deterministic init mimicking nn.Linear (uniform +/- 1/sqrt(in_features)),
    # weights stored (in, out) so the kernel does x @ W + b.
    bound = 1.0 / np.sqrt(dim)
    params = {}
    names = ["wg0", "bg0", "wl0", "bl0", "wg1", "bg1", "wl1", "bl1"]
    keys = jax.random.split(key, len(names))
    for name, k in zip(names, keys):
        shape = (dim, dim) if name.startswith("w") else (1, dim)
        params[name] = jax.random.uniform(
            k, shape, jnp.float32, minval=-bound, maxval=bound)
    return params


if __name__ == "__main__":
    key = jax.random.PRNGKey(0)
    k_word, k_char, k_params, k_word2, k_char2 = jax.random.split(key, 5)

    params = init_params(k_params, DIM)
    fused_w, fused_b = prepare_params(params)     # one-time packing, not per call

    # --- toy module-sized case (single tile) ---
    word_emb = jax.random.normal(k_word, (B, S, WORD_EMB_SIZE), jnp.float32)
    char_emb = jax.random.normal(k_char, (B, S, W, CHAR_EMB_SIZE), jnp.float32)

    out = jax.block_until_ready(embedding_forward(word_emb, char_emb, fused_w, fused_b))
    assert out.shape == (B, S, DIM)

    # Tight check vs matched-precision (bf16 activations + bf16 matmul) reference.
    np.testing.assert_allclose(
        np.asarray(out), np.asarray(_reference_bf16(word_emb, char_emb, params)),
        rtol=1e-4, atol=1e-4)
    # Loose check vs the exact f32 module semantics (bf16 rounding only).
    np.testing.assert_allclose(
        np.asarray(out), np.asarray(_reference_f32(word_emb, char_emb, params)),
        rtol=5e-2, atol=5e-2)

    # --- larger case: exercises multi-tile grid (>=2 steps) + row padding ---
    B2, S2 = 8, 72                                 # N = 576 -> tile = 512, grid = 2
    word_emb2 = jax.random.normal(k_word2, (B2, S2, WORD_EMB_SIZE), jnp.float32)
    char_emb2 = jax.random.normal(k_char2, (B2, S2, W, CHAR_EMB_SIZE), jnp.float32)

    out2 = jax.block_until_ready(embedding_forward(word_emb2, char_emb2, fused_w, fused_b))
    assert out2.shape == (B2, S2, DIM)
    np.testing.assert_allclose(
        np.asarray(out2), np.asarray(_reference_bf16(word_emb2, char_emb2, params)),
        rtol=1e-4, atol=1e-4)

    print("KERNEL_OK")
</pallas_src>

<mosaic_0001>
module attributes {stable_mosaic.version = 11 : i64} {
  func.func @highway_kernel(%arg0: i32, %arg1: memref<32x128xbf16, #tpu.memory_space<vmem>>, %arg2: memref<2x128x256xbf16, #tpu.memory_space<vmem>>, %arg3: memref<2x1x256xf32, #tpu.memory_space<vmem>>, %arg4: memref<32x128xf32, #tpu.memory_space<vmem>>) attributes {dimension_semantics = [#tpu.dimension_semantics<parallel>], iteration_bounds = array<i64: 1>, scalar_prefetch = 0 : i64, scratch_operands = 0 : i64, tpu.core_type = #tpu.core_type<tc>, window_params = [{transform_indices = @transform_0, window_bounds = array<i64: 32, 128>}, {pipeline_mode = #tpu.pipeline_mode<synchronous>, transform_indices = @transform_1, window_bounds = array<i64: 2, 128, 256>}, {pipeline_mode = #tpu.pipeline_mode<synchronous>, transform_indices = @transform_2, window_bounds = array<i64: 2, 1, 256>}, {transform_indices = @transform_3, window_bounds = array<i64: 32, 128>}]} {
    %c0 = arith.constant 0 : index
    %c0_0 = arith.constant 0 : index
    %0 = vector.load %arg1[%c0, %c0_0] : memref<32x128xbf16, #tpu.memory_space<vmem>>, vector<32x128xbf16>
    %1 = arith.extf %0 : vector<32x128xbf16> to vector<32x128xf32>
    %c0_1 = arith.constant 0 : index
    %c0_2 = arith.constant 0 : index
    %c0_3 = arith.constant 0 : index
    %2 = vector.load %arg2[%c0_1, %c0_2, %c0_3] : memref<2x128x256xbf16, #tpu.memory_space<vmem>>, vector<1x128x256xbf16>
    %3 = vector.shape_cast %2 : vector<1x128x256xbf16> to vector<128x256xbf16>
    %cst = arith.constant dense<0.000000e+00> : vector<32x256xf32>
    %4 = tpu.matmul %0, %3, %cst {dimension_numbers = #tpu.dot_dimension_numbers<[1], [0], [0], [1], [0, 0, 1, 1], [], []>} : vector<32x128xbf16>, vector<128x256xbf16>, vector<32x256xf32> -> vector<32x256xf32>
    %c0_4 = arith.constant 0 : index
    %c0_5 = arith.constant 0 : index
    %c0_6 = arith.constant 0 : index
    %5 = vector.load %arg3[%c0_4, %c0_5, %c0_6] : memref<2x1x256xf32, #tpu.memory_space<vmem>>, vector<1x1x256xf32>
    %6 = vector.shape_cast %5 : vector<1x1x256xf32> to vector<1x256xf32>
    %7 = vector.broadcast %6 : vector<1x256xf32> to vector<32x256xf32>
    %8 = arith.addf %4, %7 : vector<32x256xf32>
    %9 = vector.extract_strided_slice %8 {offsets = [0, 0], sizes = [32, 128], strides = [1, 1]} : vector<32x256xf32> to vector<32x128xf32>
    %10 = arith.negf %9 : vector<32x128xf32>
    %11 = math.exp %10 : vector<32x128xf32>
    %cst_7 = arith.constant 1.000000e+00 : f32
    %12 = vector.broadcast %cst_7 : f32 to vector<32x128xf32>
    %13 = arith.addf %12, %11 : vector<32x128xf32>
    %14 = arith.divf %12, %13 : vector<32x128xf32>
    %15 = vector.extract_strided_slice %8 {offsets = [0, 128], sizes = [32, 128], strides = [1, 1]} : vector<32x256xf32> to vector<32x128xf32>
    %cst_8 = arith.constant 0.000000e+00 : f32
    %16 = vector.broadcast %cst_8 : f32 to vector<32x128xf32>
    %17 = arith.maximumf %15, %16 : vector<32x128xf32>
    %18 = arith.subf %17, %1 : vector<32x128xf32>
    %19 = arith.mulf %14, %18 : vector<32x128xf32>
    %20 = arith.addf %1, %19 : vector<32x128xf32>
    %21 = arith.truncf %20 : vector<32x128xf32> to vector<32x128xbf16>
    %c1 = arith.constant 1 : index
    %c0_9 = arith.constant 0 : index
    %c0_10 = arith.constant 0 : index
    %22 = vector.load %arg2[%c1, %c0_9, %c0_10] : memref<2x128x256xbf16, #tpu.memory_space<vmem>>, vector<1x128x256xbf16>
    %23 = vector.shape_cast %22 : vector<1x128x256xbf16> to vector<128x256xbf16>
    %cst_11 = arith.constant dense<0.000000e+00> : vector<32x256xf32>
    %24 = tpu.matmul %21, %23, %cst_11 {dimension_numbers = #tpu.dot_dimension_numbers<[1], [0], [0], [1], [0, 0, 1, 1], [], []>} : vector<32x128xbf16>, vector<128x256xbf16>, vector<32x256xf32> -> vector<32x256xf32>
    %c1_12 = arith.constant 1 : index
    %c0_13 = arith.constant 0 : index
    %c0_14 = arith.constant 0 : index
    %25 = vector.load %arg3[%c1_12, %c0_13, %c0_14] : memref<2x1x256xf32, #tpu.memory_space<vmem>>, vector<1x1x256xf32>
    %26 = vector.shape_cast %25 : vector<1x1x256xf32> to vector<1x256xf32>
    %27 = vector.broadcast %26 : vector<1x256xf32> to vector<32x256xf32>
    %28 = arith.addf %24, %27 : vector<32x256xf32>
    %29 = vector.extract_strided_slice %28 {offsets = [0, 0], sizes = [32, 128], strides = [1, 1]} : vector<32x256xf32> to vector<32x128xf32>
    %30 = arith.negf %29 : vector<32x128xf32>
    %31 = math.exp %30 : vector<32x128xf32>
    %cst_15 = arith.constant 1.000000e+00 : f32
    %32 = vector.broadcast %cst_15 : f32 to vector<32x128xf32>
    %33 = arith.addf %32, %31 : vector<32x128xf32>
    %34 = arith.divf %32, %33 : vector<32x128xf32>
    %35 = vector.extract_strided_slice %28 {offsets = [0, 128], sizes = [32, 128], strides = [1, 1]} : vector<32x256xf32> to vector<32x128xf32>
    %cst_16 = arith.constant 0.000000e+00 : f32
    %36 = vector.broadcast %cst_16 : f32 to vector<32x128xf32>
    %37 = arith.maximumf %35, %36 : vector<32x128xf32>
    %38 = arith.subf %37, %20 : vector<32x128xf32>
    %39 = arith.mulf %34, %38 : vector<32x128xf32>
    %40 = arith.addf %20, %39 : vector<32x128xf32>
    %c0_17 = arith.constant 0 : index
    %c0_18 = arith.constant 0 : index
    %41 = vector.load %arg4[%c0_17, %c0_18] : memref<32x128xf32, #tpu.memory_space<vmem>>, vector<32x128xf32>
    tpu.vector_store %arg4[%c0_17, %c0_18], %40 {strides = array<i32>} : memref<32x128xf32, #tpu.memory_space<vmem>>, vector<32x128xf32>,
    return
  }
  func.func @transform_0(%arg0: i32) -> (i32, i32) {
    %c0_i32 = arith.constant 0 : i32
    %c0_i32_0 = arith.constant 0 : i32
    return %arg0, %c0_i32 : i32, i32
  }
  func.func @transform_1(%arg0: i32) -> (i32, i32, i32) {
    %c0_i32 = arith.constant 0 : i32
    %c0_i32_0 = arith.constant 0 : i32
    %c0_i32_1 = arith.constant 0 : i32
    %c0_i32_2 = arith.constant 0 : i32
    return %c0_i32, %c0_i32_0, %c0_i32_1 : i32, i32, i32
  }
  func.func @transform_2(%arg0: i32) -> (i32, i32, i32) {
    %c0_i32 = arith.constant 0 : i32
    %c0_i32_0 = arith.constant 0 : i32
    %c0_i32_1 = arith.constant 0 : i32
    %c0_i32_2 = arith.constant 0 : i32
    return %c0_i32, %c0_i32_0, %c0_i32_1 : i32, i32, i32
  }
  func.func @transform_3(%arg0: i32) -> (i32, i32) {
    %c0_i32 = arith.constant 0 : i32
    %c0_i32_0 = arith.constant 0 : i32
    return %arg0, %c0_i32 : i32, i32
  }
}

</mosaic_0001>

<llo_original>
// kernel: tpu_custom_call.1
$region0: #{tpu_custom_call.1}
  #allocation0 [shape = 'u32[]', space=smem, size = 0x4, offset = 0x4, fixed_abs, tag = 'smem constant byte address 0x4 - core index']
  #allocation1 [shape = 'u32[144,128]{1,0:T(1,128)}', space=vmem, size = 0x12000, scoped, tag = 'internal scratch']
  %s0 = inlined_call_operand.hbm [shape: bf16[32,128], index: 0, kind: input, shape index: {}]
  %s1 = inlined_call_operand.hbm [shape: bf16[2,128,256], index: 1, kind: input, shape index: {}]
  %s2 = inlined_call_operand.vmem [shape: f32[2,1,256], index: 2, kind: input, shape index: {}]
  %s3 = inlined_call_operand.hbm [shape: f32[32,128], index: 3, kind: output, shape index: {}]
  %s4 = sld [smem:[#allocation0]]
  $region30: #{tpu_custom_call.1} parent=0
    _
  %s6 = ssub.s32 1, %s4
  %s7 = scalar_select 0, %s6, %s4
  $region1: #{tpu_custom_call.1} parent=0
    #allocation2 [shape = 'u8[8192]{0}', space=vmem, size = 0x2000, scoped, tag = 'input window, operand 0, single buffered']
    #allocation3 [shape = 's32[1]{0}', space=sflag, size = 0x4, scoped, tag = 'scoped memory for tpu_custom_call.1']
    #allocation4 [shape = 's32[1]{0}', space=sflag, size = 0x4, scoped, tag = 'scoped memory for tpu_custom_call.1']
    #allocation5 [shape = 'u8[131072]{0}', space=vmem, size = 0x20000, scoped, tag = 'input window, operand 1, single buffered']
    #allocation6 [shape = 's32[1]{0}', space=sflag, size = 0x4, scoped, tag = 'scoped memory for tpu_custom_call.1']
    #allocation7 [shape = 'u8[16384]{0}', space=vmem, size = 0x4000, scoped, tag = 'output window, operand 0, single buffered']
    %8 = vsyncpa [#allocation3], 0
    %9 = vsyncpa [#allocation6], 0
    %10 = vsyncpa [#allocation4], 0
    // Predicated region
    $region2: #{tpu_custom_call.1} parent=1 // pred_check
      _
    $region3: #{tpu_custom_call.1} parent=1 // pred_check_branch
      %12 = sbr.rel (0) target = $region5
    $region4: #{tpu_custom_call.1} parent=1 // pred_region
      %s14 = ssub.s32 256, 256
      %15 = vsyncadd [#allocation3], %s14
      %s16 = sshll.u32 [#allocation2], 4
      %s17 = int_to_ptr.vmem [resolvable:$true] %s16
      %22 = dma.hbm_to_vmem [thread:$0]  %s0, 256, %s17, [#allocation3], 64, 64, 4
    $region5: #{tpu_custom_call.1} parent=1 // pred_fallthru
      _
    // Predicated region
    $region6: #{tpu_custom_call.1} parent=1 // pred_check
      _
    $region7: #{tpu_custom_call.1} parent=1 // pred_check_branch
      %24 = sbr.rel (0) target = $region9
    $region8: #{tpu_custom_call.1} parent=1 // pred_region
      %s26 = ssub.s32 4096, 4096
      %27 = vsyncadd [#allocation6], %s26
      %s28 = sshll.u32 [#allocation5], 4
      %s29 = int_to_ptr.vmem [resolvable:$true] %s28
      %34 = dma.hbm_to_vmem [thread:$0]  %s1, 4096, %s29, [#allocation6], 128, 128, 8
    $region9: #{tpu_custom_call.1} parent=1 // pred_fallthru
      _
    // Predicated region
    $region10: #{tpu_custom_call.1} parent=1 // pred_check
      _
    $region11: #{tpu_custom_call.1} parent=1 // pred_check_branch
      %36 = sbr.rel (0) target = $region13
    $region12: #{tpu_custom_call.1} parent=1 // pred_region
      _
    $region13: #{tpu_custom_call.1} parent=1 // pred_fallthru
      _
    // Predicated region
    $region14: #{tpu_custom_call.1} parent=1 // pred_check
      _
    $region15: #{tpu_custom_call.1} parent=1 // pred_check_branch
      %38 = sbr.rel (0) target = $region17
    $region16: #{tpu_custom_call.1} parent=1 // pred_region
      %39 = dma.done [#allocation3], 256
    $region17: #{tpu_custom_call.1} parent=1 // pred_fallthru
      _
    // Predicated region
    $region18: #{tpu_custom_call.1} parent=1 // pred_check
      _
    $region19: #{tpu_custom_call.1} parent=1 // pred_check_branch
      %41 = sbr.rel (0) target = $region21
    $region20: #{tpu_custom_call.1} parent=1 // pred_region
      %42 = dma.done [#allocation6], 4096
    $region21: #{tpu_custom_call.1} parent=1 // pred_fallthru
      _
    %v44 = vld [vmem:[#allocation2] sm:$0xf]
    %v45 = vld [vmem:[#allocation2 + $0x4] sm:$0xf]
    %v46 = vld [vmem:[#allocation2 + $0x8] sm:$0xf]
    %v47 = vld [vmem:[#allocation2 + $0xc] sm:$0xf]
    %v48 = vunpack.c.l.bf16 %v44
    %v49 = vunpack.c.l.bf16 %v45
    %v50 = vunpack.c.l.bf16 %v46
    %v51 = vunpack.c.l.bf16 %v47
    %v52 = vld [vmem:[#allocation5] sm:$0xff]
    %v53 = vld [vmem:[#allocation5 + $0x8] sm:$0xff]
    %v54 = vld [vmem:[#allocation5 + $0x10] sm:$0xff]
    %v55 = vld [vmem:[#allocation5 + $0x18] sm:$0xff]
    %v56 = vld [vmem:[#allocation5 + $0x20] sm:$0xff]
    %v57 = vld [vmem:[#allocation5 + $0x28] sm:$0xff]
    %v58 = vld [vmem:[#allocation5 + $0x30] sm:$0xff]
    %v59 = vld [vmem:[#allocation5 + $0x38] sm:$0xff]
    %v60 = vld [vmem:[#allocation5 + $0x40] sm:$0xff]
    %v61 = vld [vmem:[#allocation5 + $0x48] sm:$0xff]
    %v62 = vld [vmem:[#allocation5 + $0x50] sm:$0xff]
    %v63 = vld [vmem:[#allocation5 + $0x58] sm:$0xff]
    %v64 = vld [vmem:[#allocation5 + $0x60] sm:$0xff]
    %v65 = vld [vmem:[#allocation5 + $0x68] sm:$0xff]
    %v66 = vld [vmem:[#allocation5 + $0x70] sm:$0xff]
    %v67 = vld [vmem:[#allocation5 + $0x78] sm:$0xff]
    %v68 = vld [vmem:[%s2] sm:$0x3]
    %v70 = vlaneseq
    %v71 = vshrl.u32 %v70, 7
    %v72 = vsub.s32 0, %v71
    %v73 = vrot.slane %v68, %v72
    %v74 = vlaneseq
    %v75 = vshrl.u32 %v74, 7
    %v76 = vsub.s32 1, %v75
    %v77 = vrot.slane %v68, %v76
    %v84 = vunpack.c.l.b16 %v44
    %v85 = vunpack.c.l.b16 %v45
    %v86 = vunpack.c.l.b16 %v46
    %v87 = vunpack.c.l.b16 %v47
    %v88 = vpack.c.b16 %v85, %v84
    %v89 = vpack.c.b16 %v87, %v86
    %v108 = vunpack.c.l.b16 %v52
    %v109 = vunpack.c.h.b16 %v52
    %v110 = vunpack.c.l.b16 %v53
    %v111 = vunpack.c.h.b16 %v53
    %v112 = vunpack.c.l.b16 %v54
    %v113 = vunpack.c.h.b16 %v54
    %v114 = vunpack.c.l.b16 %v55
    %v115 = vunpack.c.h.b16 %v55
    %v116 = vunpack.c.l.b16 %v56
    %v117 = vunpack.c.h.b16 %v56
    %v118 = vunpack.c.l.b16 %v57
    %v119 = vunpack.c.h.b16 %v57
    %v120 = vunpack.c.l.b16 %v58
    %v121 = vunpack.c.h.b16 %v58
    %v122 = vunpack.c.l.b16 %v59
    %v123 = vunpack.c.h.b16 %v59
    %v124 = vunpack.c.l.b16 %v60
    %v125 = vunpack.c.h.b16 %v60
    %v126 = vunpack.c.l.b16 %v61
    %v127 = vunpack.c.h.b16 %v61
    %v128 = vunpack.c.l.b16 %v62
    %v129 = vunpack.c.h.b16 %v62
    %v130 = vunpack.c.l.b16 %v63
    %v131 = vunpack.c.h.b16 %v63
    %v132 = vunpack.c.l.b16 %v64
    %v133 = vunpack.c.h.b16 %v64
    %v134 = vunpack.c.l.b16 %v65
    %v135 = vunpack.c.h.b16 %v65
    %v136 = vunpack.c.l.b16 %v66
    %v137 = vunpack.c.h.b16 %v66
    %v138 = vunpack.c.l.b16 %v67
    %v139 = vunpack.c.h.b16 %v67
    %v140 = vpack.c.b16 %v110, %v108
    %v141 = vpack.c.b16 %v111, %v109
    %v142 = vpack.c.b16 %v114, %v112
    %v143 = vpack.c.b16 %v115, %v113
    %v144 = vpack.c.b16 %v118, %v116
    %v145 = vpack.c.b16 %v119, %v117
    %v146 = vpack.c.b16 %v122, %v120
    %v147 = vpack.c.b16 %v123, %v121
    %v148 = vpack.c.b16 %v126, %v124
    %v149 = vpack.c.b16 %v127, %v125
    %v150 = vpack.c.b16 %v130, %v128
    %v151 = vpack.c.b16 %v131, %v129
    %v152 = vpack.c.b16 %v134, %v132
    %v153 = vpack.c.b16 %v135, %v133
    %v154 = vpack.c.b16 %v138, %v136
    %v155 = vpack.c.b16 %v139, %v137
    %172 = vmatprep.subr.bf16.mxu0 %v141
    %173 = vmatpush1.bf16.msra.mxu0 %v140
    %174 = vmatprep.subr.bf16.mxu0 %v143
    %175 = vmatpush1.bf16.msra.mxu0 %v142
    %176 = vmatprep.subr.bf16.mxu0 %v145
    %177 = vmatpush1.bf16.msra.mxu0 %v144
    %178 = vmatprep.subr.bf16.mxu0 %v147
    %179 = vmatpush1.bf16.msra.mxu0 %v146
    %180 = vmatprep.subr.bf16.mxu0 %v149
    %181 = vmatpush1.bf16.msra.mxu0 %v148
    %182 = vmatprep.subr.bf16.mxu0 %v151
    %183 = vmatpush1.bf16.msra.mxu0 %v150
    %184 = vmatprep.subr.bf16.mxu0 %v153
    %185 = vmatpush1.bf16.msra.mxu0 %v152
    %186 = vmatprep.subr.bf16.mxu0 %v155
    %187 = vmatpush1.bf16.msra.mxu0 %v154
    %188 = vmatprep.subr.bf16.mxu0 0
    %189 = vmatpush1.bf16.msra.mxu0 0
    %190 = vmatprep.subr.bf16.mxu0 0
    %191 = vmatpush1.bf16.msra.mxu0 0
    %192 = vmatprep.subr.bf16.mxu0 0
    %193 = vmatpush1.bf16.msra.mxu0 0
    %194 = vmatprep.subr.bf16.mxu0 0
    %195 = vmatpush1.bf16.msra.mxu0 0
    %196 = vmatprep.subr.bf16.mxu0 0
    %197 = vmatpush1.bf16.msra.mxu0 0
    %198 = vmatprep.subr.bf16.mxu0 0
    %199 = vmatpush1.bf16.msra.mxu0 0
    %200 = vmatprep.subr.bf16.mxu0 0
    %201 = vmatpush1.bf16.msra.mxu0 0
    %202 = vmatprep.subr.bf16.mxu0 0
    %203 = vmatpush1.bf16.msra.mxu0 0
    %204 = vmatprep.mubr.bf16.mxu0 0
    %205 = vmatmul.mubr.bf16.gmra.mrb[0].mxu0 %v88
    %v206 = vpop.f32.mrb[0].mxu0
    %v207 = vadd.f32 %v73, %v206
    %v208 = vpop.f32.mrb[0].mxu0
    %v209 = vadd.f32 %v77, %v208
    %v210 = vpop.f32.mrb[0].mxu0
    %v211 = vadd.f32 %v73, %v210
    %v212 = vpop.f32.mrb[0].mxu0
    %v213 = vadd.f32 %v77, %v212
    %214 = vmatprep.mubr.bf16.mxu0 0
    %215 = vmatmul.mubr.bf16.gmra.mrb[0].mxu0 %v89
    %v216 = vpop.f32.mrb[0].mxu0
    %v217 = vadd.f32 %v73, %v216
    %v218 = vpop.f32.mrb[0].mxu0
    %v219 = vadd.f32 %v77, %v218
    %v220 = vpop.f32.mrb[0].mxu0
    %v221 = vadd.f32 %v73, %v220
    %v222 = vpop.f32.mrb[0].mxu0
    %v223 = vadd.f32 %v77, %v222
    %224 = vdwg.mxu0
    %v225 = vxor.u32 %v207, 2147483648
    %v226 = vxor.u32 %v211, 2147483648
    %v227 = vxor.u32 %v217, 2147483648
    %v228 = vxor.u32 %v221, 2147483648
    %v229 = vmul.f32 %v225, 1.442695
    %v230 = vpow.pop %v229
    %v231 = vmul.f32 %v226, 1.442695
    %v232 = vpow.pop %v231
    %v233 = vmul.f32 %v227, 1.442695
    %v234 = vpow.pop %v233
    %v235 = vmul.f32 %v228, 1.442695
    %v236 = vpow.pop %v235
    %v237 = vadd.f32 %v230, 1.0
    %v238 = vadd.f32 %v232, 1.0
    %v239 = vadd.f32 %v234, 1.0
    %v240 = vadd.f32 %v236, 1.0
    %v241 = vrcp.pop %v237
    %v242 = vmul.f32 1.0, %v241
    %v243 = vrcp.pop %v238
    %v244 = vmul.f32 1.0, %v243
    %v245 = vrcp.pop %v239
    %v246 = vmul.f32 1.0, %v245
    %v247 = vrcp.pop %v240
    %v248 = vmul.f32 1.0, %v247
    %v249 = vmax.f32 %v209, 0.0
    %v250 = vmax.f32 %v213, 0.0
    %v251 = vmax.f32 %v219, 0.0
    %v252 = vmax.f32 %v223, 0.0
    %v253 = vsub.f32 %v249, %v48
    %v254 = vsub.f32 %v250, %v49
    %v255 = vsub.f32 %v251, %v50
    %v256 = vsub.f32 %v252, %v51
    %v257 = vmul.f32 %v242, %v253
    %v258 = vmul.f32 %v244, %v254
    %v259 = vmul.f32 %v246, %v255
    %v260 = vmul.f32 %v248, %v256
    %v261 = vadd.f32 %v48, %v257
    %v262 = vadd.f32 %v49, %v258
    %v263 = vadd.f32 %v50, %v259
    %v264 = vadd.f32 %v51, %v260
    %v265 = vpack.c.bf16 %v262, %v261
    %v266 = vpack.c.bf16 %v264, %v263
    %s267 = scalar_lea.vmem [#allocation5], 128
    %v268 = vld [vmem:[%s267] sm:$0xff]
    %v269 = vld [vmem:[%s267 + $0x8] sm:$0xff]
    %v270 = vld [vmem:[%s267 + $0x10] sm:$0xff]
    %v271 = vld [vmem:[%s267 + $0x18] sm:$0xff]
    %v272 = vld [vmem:[%s267 + $0x20] sm:$0xff]
    %v273 = vld [vmem:[%s267 + $0x28] sm:$0xff]
    %v274 = vld [vmem:[%s267 + $0x30] sm:$0xff]
    %v275 = vld [vmem:[%s267 + $0x38] sm:$0xff]
    %v276 = vld [vmem:[%s267 + $0x40] sm:$0xff]
    %v277 = vld [vmem:[%s267 + $0x48] sm:$0xff]
    %v278 = vld [vmem:[%s267 + $0x50] sm:$0xff]
    %v279 = vld [vmem:[%s267 + $0x58] sm:$0xff]
    %v280 = vld [vmem:[%s267 + $0x60] sm:$0xff]
    %v281 = vld [vmem:[%s267 + $0x68] sm:$0xff]
    %v282 = vld [vmem:[%s267 + $0x70] sm:$0xff]
    %v283 = vld [vmem:[%s267 + $0x78] sm:$0xff]
    %s284 = scalar_lea.vmem %s2, 2
    %v285 = vld [vmem:[%s284] sm:$0x3]
    %v287 = vlaneseq
    %v288 = vshrl.u32 %v287, 7
    %v289 = vsub.s32 0, %v288
    %v290 = vrot.slane %v285, %v289
    %v291 = vlaneseq
    %v292 = vshrl.u32 %v291, 7
    %v293 = vsub.s32 1, %v292
    %v294 = vrot.slane %v285, %v293
    %v313 = vunpack.c.l.b16 %v268
    %v314 = vunpack.c.h.b16 %v268
    %v315 = vunpack.c.l.b16 %v269
    %v316 = vunpack.c.h.b16 %v269
    %v317 = vunpack.c.l.b16 %v270
    %v318 = vunpack.c.h.b16 %v270
    %v319 = vunpack.c.l.b16 %v271
    %v320 = vunpack.c.h.b16 %v271
    %v321 = vunpack.c.l.b16 %v272
    %v322 = vunpack.c.h.b16 %v272
    %v323 = vunpack.c.l.b16 %v273
    %v324 = vunpack.c.h.b16 %v273
    %v325 = vunpack.c.l.b16 %v274
    %v326 = vunpack.c.h.b16 %v274
    %v327 = vunpack.c.l.b16 %v275
    %v328 = vunpack.c.h.b16 %v275
    %v329 = vunpack.c.l.b16 %v276
    %v330 = vunpack.c.h.b16 %v276
    %v331 = vunpack.c.l.b16 %v277
    %v332 = vunpack.c.h.b16 %v277
    %v333 = vunpack.c.l.b16 %v278
    %v334 = vunpack.c.h.b16 %v278
    %v335 = vunpack.c.l.b16 %v279
    %v336 = vunpack.c.h.b16 %v279
    %v337 = vunpack.c.l.b16 %v280
    %v338 = vunpack.c.h.b16 %v280
    %v339 = vunpack.c.l.b16 %v281
    %v340 = vunpack.c.h.b16 %v281
    %v341 = vunpack.c.l.b16 %v282
    %v342 = vunpack.c.h.b16 %v282
    %v343 = vunpack.c.l.b16 %v283
    %v344 = vunpack.c.h.b16 %v283
    %v345 = vpack.c.b16 %v315, %v313
    %v346 = vpack.c.b16 %v316, %v314
    %v347 = vpack.c.b16 %v319, %v317
    %v348 = vpack.c.b16 %v320, %v318
    %v349 = vpack.c.b16 %v323, %v321
    %v350 = vpack.c.b16 %v324, %v322
    %v351 = vpack.c.b16 %v327, %v325
    %v352 = vpack.c.b16 %v328, %v326
    %v353 = vpack.c.b16 %v331, %v329
    %v354 = vpack.c.b16 %v332, %v330
    %v355 = vpack.c.b16 %v335, %v333
    %v356 = vpack.c.b16 %v336, %v334
    %v357 = vpack.c.b16 %v339, %v337
    %v358 = vpack.c.b16 %v340, %v338
    %v359 = vpack.c.b16 %v343, %v341
    %v360 = vpack.c.b16 %v344, %v342
    %377 = vmatprep.subr.bf16.mxu0 %v346
    %378 = vmatpush1.bf16.msra.mxu0 %v345
    %379 = vmatprep.subr.bf16.mxu0 %v348
    %380 = vmatpush1.bf16.msra.mxu0 %v347
    %381 = vmatprep.subr.bf16.mxu0 %v350
    %382 = vmatpush1.bf16.msra.mxu0 %v349
    %383 = vmatprep.subr.bf16.mxu0 %v352
    %384 = vmatpush1.bf16.msra.mxu0 %v351
    %385 = vmatprep.subr.bf16.mxu0 %v354
    %386 = vmatpush1.bf16.msra.mxu0 %v353
    %387 = vmatprep.subr.bf16.mxu0 %v356
    %388 = vmatpush1.bf16.msra.mxu0 %v355
    %389 = vmatprep.subr.bf16.mxu0 %v358
    %390 = vmatpush1.bf16.msra.mxu0 %v357
    %391 = vmatprep.subr.bf16.mxu0 %v360
    %392 = vmatpush1.bf16.msra.mxu0 %v359
    %393 = vmatprep.subr.bf16.mxu0 0
    %394 = vmatpush1.bf16.msra.mxu0 0
    %395 = vmatprep.subr.bf16.mxu0 0
    %396 = vmatpush1.bf16.msra.mxu0 0
    %397 = vmatprep.subr.bf16.mxu0 0
    %398 = vmatpush1.bf16.msra.mxu0 0
    %399 = vmatprep.subr.bf16.mxu0 0
    %400 = vmatpush1.bf16.msra.mxu0 0
    %401 = vmatprep.subr.bf16.mxu0 0
    %402 = vmatpush1.bf16.msra.mxu0 0
    %403 = vmatprep.subr.bf16.mxu0 0
    %404 = vmatpush1.bf16.msra.mxu0 0
    %405 = vmatprep.subr.bf16.mxu0 0
    %406 = vmatpush1.bf16.msra.mxu0 0
    %407 = vmatprep.subr.bf16.mxu0 0
    %408 = vmatpush1.bf16.msra.mxu0 0
    %409 = vmatprep.mubr.bf16.mxu0 0
    %410 = vmatmul.mubr.bf16.gmra.mrb[0].mxu0 %v265
    %v411 = vpop.f32.mrb[0].mxu0
    %v412 = vadd.f32 %v290, %v411
    %v413 = vpop.f32.mrb[0].mxu0
    %v414 = vadd.f32 %v294, %v413
    %v415 = vpop.f32.mrb[0].mxu0
    %v416 = vadd.f32 %v290, %v415
    %v417 = vpop.f32.mrb[0].mxu0
    %v418 = vadd.f32 %v294, %v417
    %419 = vmatprep.mubr.bf16.mxu0 0
    %420 = vmatmul.mubr.bf16.gmra.mrb[0].mxu0 %v266
    %v421 = vpop.f32.mrb[0].mxu0
    %v422 = vadd.f32 %v290, %v421
    %v423 = vpop.f32.mrb[0].mxu0
    %v424 = vadd.f32 %v294, %v423
    %v425 = vpop.f32.mrb[0].mxu0
    %v426 = vadd.f32 %v290, %v425
    %v427 = vpop.f32.mrb[0].mxu0
    %v428 = vadd.f32 %v294, %v427
    %429 = vdwg.mxu0
    %v430 = vxor.u32 %v412, 2147483648
    %v431 = vxor.u32 %v416, 2147483648
    %v432 = vxor.u32 %v422, 2147483648
    %v433 = vxor.u32 %v426, 2147483648
    %v434 = vmul.f32 %v430, 1.442695
    %v435 = vpow.pop %v434
    %v436 = vmul.f32 %v431, 1.442695
    %v437 = vpow.pop %v436
    %v438 = vmul.f32 %v432, 1.442695
    %v439 = vpow.pop %v438
    %v440 = vmul.f32 %v433, 1.442695
    %v441 = vpow.pop %v440
    %v442 = vadd.f32 %v435, 1.0
    %v443 = vadd.f32 %v437, 1.0
    %v444 = vadd.f32 %v439, 1.0
    %v445 = vadd.f32 %v441, 1.0
    %v446 = vrcp.pop %v442
    %v447 = vmul.f32 1.0, %v446
    %v448 = vrcp.pop %v443
    %v449 = vmul.f32 1.0, %v448
    %v450 = vrcp.pop %v444
    %v451 = vmul.f32 1.0, %v450
    %v452 = vrcp.pop %v445
    %v453 = vmul.f32 1.0, %v452
    %v454 = vmax.f32 %v414, 0.0
    %v455 = vmax.f32 %v418, 0.0
    %v456 = vmax.f32 %v424, 0.0
    %v457 = vmax.f32 %v428, 0.0
    %v458 = vsub.f32 %v454, %v261
    %v459 = vsub.f32 %v455, %v262
    %v460 = vsub.f32 %v456, %v263
    %v461 = vsub.f32 %v457, %v264
    %v462 = vmul.f32 %v447, %v458
    %v463 = vmul.f32 %v449, %v459
    %v464 = vmul.f32 %v451, %v460
    %v465 = vmul.f32 %v453, %v461
    %v466 = vadd.f32 %v261, %v462
    %v467 = vadd.f32 %v262, %v463
    %v468 = vadd.f32 %v263, %v464
    %v469 = vadd.f32 %v264, %v465
    %470 = vst [vmem:[#allocation7] sm:$0xff] %v466
    %471 = vst [vmem:[#allocation7 + $0x8] sm:$0xff] %v467
    %472 = vst [vmem:[#allocation7 + $0x10] sm:$0xff] %v468
    %473 = vst [vmem:[#allocation7 + $0x18] sm:$0xff] %v469
    // Predicated region
    $region22: #{tpu_custom_call.1} parent=1 // pred_check
      _
    $region23: #{tpu_custom_call.1} parent=1 // pred_check_branch
      %475 = sbr.rel (0) target = $region25
    $region24: #{tpu_custom_call.1} parent=1 // pred_region
      %s477 = ssub.s32 512, 512
      %478 = vsyncadd [#allocation4], %s477
      %s479 = sshll.u32 [#allocation7], 4
      %s480 = int_to_ptr.vmem [resolvable:$true] %s479
      %485 = dma.vmem_to_hbm [thread:$0]  %s480, 512, %s3, [#allocation4], 128, 128, 8
    $region25: #{tpu_custom_call.1} parent=1 // pred_fallthru
      _
    // Predicated region
    $region26: #{tpu_custom_call.1} parent=1 // pred_check
      _
    $region27: #{tpu_custom_call.1} parent=1 // pred_check_branch
      %487 = sbr.rel (0) target = $region29
    $region28: #{tpu_custom_call.1} parent=1 // pred_region
      %488 = dma.done [#allocation4], 512
    $region29: #{tpu_custom_call.1} parent=1 // pred_fallthru
      _
    %489 = vsyncpa [#allocation3], 1
    %490 = vsyncpa [#allocation6], 1
    %491 = vsyncpa [#allocation4], 1

</llo_original>
